<compile_context>
chip_gen: v7x
topology: tpu7x:2x2x1
jax: 0.10.0
libtpu: 0.0.40
codegen_flags: <defaults>
</compile_context>

<pallas_src>
import jax
import jax.numpy as jnp
from jax.experimental import pallas as pl
from jax.experimental.pallas import tpu as pltpu


def _conv_chain_kernel(x_ref, p_ref, out_ref):
    # x_ref  : (8, Wx)    VMEM — 8 batch rows, zero-padded to Wx = Wo + 4 lanes
    # p_ref  : (48,)      SMEM — w1[o,k]=p[3o+k], b1[o]=p[9+o],
    #                            w2[o,i,k]=p[12+9o+3i+k], b2[o]=p[39+o]
    # out_ref: (3, 8, Wo) VMEM — one lane-dense (8, Wo) slab per output channel
    Wo = out_ref.shape[-1]
    W2 = Wo + 2

    x = x_ref[...]                                         # (8, Wx), single load

    # conv1d1: 1 -> 3 channels, kernel=3, padding=0.
    # Scalar-weight MACs on lane-shifted slices; batch fills all 8 sublanes so no
    # sublane broadcast is needed. Accumulator seeded with bias + tap 0.
    x2 = []
    for o in range(3):
        acc = p_ref[9 + o] + p_ref[3 * o + 0] * x[:, 0:W2]
        acc = acc + p_ref[3 * o + 1] * x[:, 1:1 + W2]
        acc = acc + p_ref[3 * o + 2] * x[:, 2:2 + W2]
        x2.append(acc)                                     # (8, W2)

    # Hoist the 9 lane-shifted views of x2 (shared by all 3 output channels;
    # the k=1 view doubles as the residual operand).
    x2_sl = [[x2[i][:, k:k + Wo] for k in range(3)] for i in range(3)]

    # conv1d2: 3 -> 3 channels, kernel=3, padding=0, then square + residual.
    for o in range(3):
        acc = p_ref[39 + o] + p_ref[12 + 9 * o] * x2_sl[0][0]
        for i in range(3):                                 # static, unrolled
            for k in range(3):
                if i == 0 and k == 0:
                    continue
                acc = acc + p_ref[12 + 9 * o + 3 * i + k] * x2_sl[i][k]
        # x4 = x3**2 ; x5 = x4 + x2 (center-aligned crop). Full unmasked slab store.
        out_ref[o] = acc * acc + x2_sl[o][1]


def pack_params(w1, b1, w2, b2):
    """Pack all conv parameters into one flat (48,) f32 SMEM slab.
    Hoisted out of the hot path: call once per weight update."""
    return jnp.concatenate([
        jnp.asarray(w1, jnp.float32).reshape(9),     # w1[o,k]   -> [3o+k]
        jnp.asarray(b1, jnp.float32).reshape(3),     # b1[o]     -> [9+o]
        jnp.asarray(w2, jnp.float32).reshape(27),    # w2[o,i,k] -> [12+9o+3i+k]
        jnp.asarray(b2, jnp.float32).reshape(3),     # b2[o]     -> [39+o]
        jnp.zeros((6,), jnp.float32),                # pad to 48
    ])


@jax.jit
def conv_chain(x, params):
    """x: (B, 1, L) f32 NCL; params: (48,) from pack_params. Returns (B, 3, L-4) f32."""
    B, _, L = x.shape
    Lo = L - 4
    Wo = ((Lo + 127) // 128) * 128      # lane-dense output width (unmasked vst)
    Wx = Wo + 4
    Bp = ((B + 7) // 8) * 8             # batch rounded up to full sublane groups
    G = Bp // 8

    # Single fused pad: batch -> multiple of 8 rows, length -> Wx lanes.
    x_pad = jnp.pad(x.reshape(B, L).astype(jnp.float32),
                    ((0, Bp - B), (0, Wx - L)))

    out = pl.pallas_call(
        _conv_chain_kernel,
        out_shape=jax.ShapeDtypeStruct((3, Bp, Wo), jnp.float32),
        grid=(G,),
        in_specs=[
            pl.BlockSpec((8, Wx), lambda g: (g, 0)),
            pl.BlockSpec(memory_space=pltpu.MemorySpace.SMEM),
        ],
        out_specs=pl.BlockSpec((3, 8, Wo), lambda g: (0, g, 0)),
        compiler_params=pltpu.CompilerParams(
            dimension_semantics=("parallel",)),   # shard batch blocks across TCs (v7x)
    )(x_pad, params)

    # (3, Bp, Wo) -> (B, 3, Lo): one fused transpose + crop (lane/batch padding dropped).
    return jnp.transpose(out, (1, 0, 2))[:B, :, :Lo]


def _reference(x, w1, b1, w2, b2):
    # Pure-JAX reference (self-consistent interpretation of the module).
    B, _, L = x.shape
    x2d = x.reshape(B, L)
    L2, L3 = L - 2, L - 4
    x2 = sum(w1[None, :, k:k + 1] * x2d[:, None, k:k + L2] for k in range(3)) \
        + b1.reshape(1, 3, 1)
    x3 = sum(jnp.einsum('oi,bit->bot', w2[:, :, k], x2[:, :, k:k + L3]) for k in range(3)) \
        + b2.reshape(1, 3, 1)
    return x3 ** 2 + x2[:, :, 1:1 + L3]


if __name__ == "__main__":
    key = jax.random.PRNGKey(0)
    k_x, k_w1, k_b1, k_w2, k_b2 = jax.random.split(key, 5)

    # Batched version of the spec's (1, 1, 100) input; B=13 also exercises the
    # batch-padding path (padded rows / lanes are cropped away).
    B, L = 13, 100
    x1 = jax.random.normal(k_x, (B, 1, L), dtype=jnp.float32)

    # Deterministic PyTorch-style uniform(-1/sqrt(fan_in), 1/sqrt(fan_in)) init.
    bound1 = 1.0 / jnp.sqrt(1.0 * 3.0)   # conv1: fan_in = in_ch(1) * k(3)
    bound2 = 1.0 / jnp.sqrt(3.0 * 3.0)   # conv2: fan_in = in_ch(3) * k(3)
    w1 = jax.random.uniform(k_w1, (3, 3), jnp.float32, -bound1, bound1)      # (out, k)
    b1 = jax.random.uniform(k_b1, (3,), jnp.float32, -bound1, bound1)
    w2 = jax.random.uniform(k_w2, (3, 3, 3), jnp.float32, -bound2, bound2)   # (out, in, k)
    b2 = jax.random.uniform(k_b2, (3,), jnp.float32, -bound2, bound2)

    params = pack_params(w1, b1, w2, b2)     # packed once, outside the hot path
    out = conv_chain(x1, params)
    jax.block_until_ready(out)

    ref = _reference(x1, w1, b1, w2, b2)
    assert out.shape == (B, 3, L - 4)
    assert jnp.allclose(out, ref, atol=1e-5, rtol=1e-5), float(jnp.max(jnp.abs(out - ref)))

    print("KERNEL_OK")
</pallas_src>

<mosaic_0001>
module attributes {stable_mosaic.version = 11 : i64} {
  func.func @_conv_chain_kernel(%arg0: i32, %arg1: memref<8x132xf32, #tpu.memory_space<vmem>>, %arg2: memref<48xf32, #tpu.memory_space<smem>>, %arg3: memref<3x8x128xf32, #tpu.memory_space<vmem>>) attributes {dimension_semantics = [#tpu.dimension_semantics<parallel>], iteration_bounds = array<i64: 2>, scalar_prefetch = 0 : i64, scratch_operands = 0 : i64, tpu.core_type = #tpu.core_type<tc>, window_params = [{transform_indices = @transform_0, window_bounds = array<i64: 8, 132>}, {transform_indices = @transform_1, window_bounds = array<i64: 48>}, {transform_indices = @transform_2, window_bounds = array<i64: 3, 8, 128>}]} {
    %c0 = arith.constant 0 : index
    %c0_0 = arith.constant 0 : index
    %0 = vector.load %arg1[%c0, %c0_0] : memref<8x132xf32, #tpu.memory_space<vmem>>, vector<8x132xf32>
    %c9 = arith.constant 9 : index
    %1 = memref.load %arg2[%c9] : memref<48xf32, #tpu.memory_space<smem>>
    %c0_1 = arith.constant 0 : index
    %2 = memref.load %arg2[%c0_1] : memref<48xf32, #tpu.memory_space<smem>>
    %3 = vector.extract_strided_slice %0 {offsets = [0, 0], sizes = [8, 130], strides = [1, 1]} : vector<8x132xf32> to vector<8x130xf32>
    %4 = vector.broadcast %2 : f32 to vector<8x130xf32>
    %5 = arith.mulf %4, %3 : vector<8x130xf32>
    %6 = vector.broadcast %1 : f32 to vector<8x130xf32>
    %7 = arith.addf %6, %5 : vector<8x130xf32>
    %c1 = arith.constant 1 : index
    %8 = memref.load %arg2[%c1] : memref<48xf32, #tpu.memory_space<smem>>
    %9 = vector.extract_strided_slice %0 {offsets = [0, 1], sizes = [8, 130], strides = [1, 1]} : vector<8x132xf32> to vector<8x130xf32>
    %10 = vector.broadcast %8 : f32 to vector<8x130xf32>
    %11 = arith.mulf %10, %9 : vector<8x130xf32>
    %12 = arith.addf %7, %11 : vector<8x130xf32>
    %c2 = arith.constant 2 : index
    %13 = memref.load %arg2[%c2] : memref<48xf32, #tpu.memory_space<smem>>
    %14 = vector.extract_strided_slice %0 {offsets = [0, 2], sizes = [8, 130], strides = [1, 1]} : vector<8x132xf32> to vector<8x130xf32>
    %15 = vector.broadcast %13 : f32 to vector<8x130xf32>
    %16 = arith.mulf %15, %14 : vector<8x130xf32>
    %17 = arith.addf %12, %16 : vector<8x130xf32>
    %c10 = arith.constant 10 : index
    %18 = memref.load %arg2[%c10] : memref<48xf32, #tpu.memory_space<smem>>
    %c3 = arith.constant 3 : index
    %19 = memref.load %arg2[%c3] : memref<48xf32, #tpu.memory_space<smem>>
    %20 = vector.extract_strided_slice %0 {offsets = [0, 0], sizes = [8, 130], strides = [1, 1]} : vector<8x132xf32> to vector<8x130xf32>
    %21 = vector.broadcast %19 : f32 to vector<8x130xf32>
    %22 = arith.mulf %21, %20 : vector<8x130xf32>
    %23 = vector.broadcast %18 : f32 to vector<8x130xf32>
    %24 = arith.addf %23, %22 : vector<8x130xf32>
    %c4 = arith.constant 4 : index
    %25 = memref.load %arg2[%c4] : memref<48xf32, #tpu.memory_space<smem>>
    %26 = vector.extract_strided_slice %0 {offsets = [0, 1], sizes = [8, 130], strides = [1, 1]} : vector<8x132xf32> to vector<8x130xf32>
    %27 = vector.broadcast %25 : f32 to vector<8x130xf32>
    %28 = arith.mulf %27, %26 : vector<8x130xf32>
    %29 = arith.addf %24, %28 : vector<8x130xf32>
    %c5 = arith.constant 5 : index
    %30 = memref.load %arg2[%c5] : memref<48xf32, #tpu.memory_space<smem>>
    %31 = vector.extract_strided_slice %0 {offsets = [0, 2], sizes = [8, 130], strides = [1, 1]} : vector<8x132xf32> to vector<8x130xf32>
    %32 = vector.broadcast %30 : f32 to vector<8x130xf32>
    %33 = arith.mulf %32, %31 : vector<8x130xf32>
    %34 = arith.addf %29, %33 : vector<8x130xf32>
    %c11 = arith.constant 11 : index
    %35 = memref.load %arg2[%c11] : memref<48xf32, #tpu.memory_space<smem>>
    %c6 = arith.constant 6 : index
    %36 = memref.load %arg2[%c6] : memref<48xf32, #tpu.memory_space<smem>>
    %37 = vector.extract_strided_slice %0 {offsets = [0, 0], sizes = [8, 130], strides = [1, 1]} : vector<8x132xf32> to vector<8x130xf32>
    %38 = vector.broadcast %36 : f32 to vector<8x130xf32>
    %39 = arith.mulf %38, %37 : vector<8x130xf32>
    %40 = vector.broadcast %35 : f32 to vector<8x130xf32>
    %41 = arith.addf %40, %39 : vector<8x130xf32>
    %c7 = arith.constant 7 : index
    %42 = memref.load %arg2[%c7] : memref<48xf32, #tpu.memory_space<smem>>
    %43 = vector.extract_strided_slice %0 {offsets = [0, 1], sizes = [8, 130], strides = [1, 1]} : vector<8x132xf32> to vector<8x130xf32>
    %44 = vector.broadcast %42 : f32 to vector<8x130xf32>
    %45 = arith.mulf %44, %43 : vector<8x130xf32>
    %46 = arith.addf %41, %45 : vector<8x130xf32>
    %c8 = arith.constant 8 : index
    %47 = memref.load %arg2[%c8] : memref<48xf32, #tpu.memory_space<smem>>
    %48 = vector.extract_strided_slice %0 {offsets = [0, 2], sizes = [8, 130], strides = [1, 1]} : vector<8x132xf32> to vector<8x130xf32>
    %49 = vector.broadcast %47 : f32 to vector<8x130xf32>
    %50 = arith.mulf %49, %48 : vector<8x130xf32>
    %51 = arith.addf %46, %50 : vector<8x130xf32>
    %52 = vector.extract_strided_slice %17 {offsets = [0, 0], sizes = [8, 128], strides = [1, 1]} : vector<8x130xf32> to vector<8x128xf32>
    %53 = vector.extract_strided_slice %17 {offsets = [0, 1], sizes = [8, 128], strides = [1, 1]} : vector<8x130xf32> to vector<8x128xf32>
    %54 = vector.extract_strided_slice %17 {offsets = [0, 2], sizes = [8, 128], strides = [1, 1]} : vector<8x130xf32> to vector<8x128xf32>
    %55 = vector.extract_strided_slice %34 {offsets = [0, 0], sizes = [8, 128], strides = [1, 1]} : vector<8x130xf32> to vector<8x128xf32>
    %56 = vector.extract_strided_slice %34 {offsets = [0, 1], sizes = [8, 128], strides = [1, 1]} : vector<8x130xf32> to vector<8x128xf32>
    %57 = vector.extract_strided_slice %34 {offsets = [0, 2], sizes = [8, 128], strides = [1, 1]} : vector<8x130xf32> to vector<8x128xf32>
    %58 = vector.extract_strided_slice %51 {offsets = [0, 0], sizes = [8, 128], strides = [1, 1]} : vector<8x130xf32> to vector<8x128xf32>
    %59 = vector.extract_strided_slice %51 {offsets = [0, 1], sizes = [8, 128], strides = [1, 1]} : vector<8x130xf32> to vector<8x128xf32>
    %60 = vector.extract_strided_slice %51 {offsets = [0, 2], sizes = [8, 128], strides = [1, 1]} : vector<8x130xf32> to vector<8x128xf32>
    %c39 = arith.constant 39 : index
    %61 = memref.load %arg2[%c39] : memref<48xf32, #tpu.memory_space<smem>>
    %c12 = arith.constant 12 : index
    %62 = memref.load %arg2[%c12] : memref<48xf32, #tpu.memory_space<smem>>
    %63 = vector.broadcast %62 : f32 to vector<8x128xf32>
    %64 = arith.mulf %63, %52 : vector<8x128xf32>
    %65 = vector.broadcast %61 : f32 to vector<8x128xf32>
    %66 = arith.addf %65, %64 : vector<8x128xf32>
    %c13 = arith.constant 13 : index
    %67 = memref.load %arg2[%c13] : memref<48xf32, #tpu.memory_space<smem>>
    %68 = vector.broadcast %67 : f32 to vector<8x128xf32>
    %69 = arith.mulf %68, %53 : vector<8x128xf32>
    %70 = arith.addf %66, %69 : vector<8x128xf32>
    %c14 = arith.constant 14 : index
    %71 = memref.load %arg2[%c14] : memref<48xf32, #tpu.memory_space<smem>>
    %72 = vector.broadcast %71 : f32 to vector<8x128xf32>
    %73 = arith.mulf %72, %54 : vector<8x128xf32>
    %74 = arith.addf %70, %73 : vector<8x128xf32>
    %c15 = arith.constant 15 : index
    %75 = memref.load %arg2[%c15] : memref<48xf32, #tpu.memory_space<smem>>
    %76 = vector.broadcast %75 : f32 to vector<8x128xf32>
    %77 = arith.mulf %76, %55 : vector<8x128xf32>
    %78 = arith.addf %74, %77 : vector<8x128xf32>
    %c16 = arith.constant 16 : index
    %79 = memref.load %arg2[%c16] : memref<48xf32, #tpu.memory_space<smem>>
    %80 = vector.broadcast %79 : f32 to vector<8x128xf32>
    %81 = arith.mulf %80, %56 : vector<8x128xf32>
    %82 = arith.addf %78, %81 : vector<8x128xf32>
    %c17 = arith.constant 17 : index
    %83 = memref.load %arg2[%c17] : memref<48xf32, #tpu.memory_space<smem>>
    %84 = vector.broadcast %83 : f32 to vector<8x128xf32>
    %85 = arith.mulf %84, %57 : vector<8x128xf32>
    %86 = arith.addf %82, %85 : vector<8x128xf32>
    %c18 = arith.constant 18 : index
    %87 = memref.load %arg2[%c18] : memref<48xf32, #tpu.memory_space<smem>>
    %88 = vector.broadcast %87 : f32 to vector<8x128xf32>
    %89 = arith.mulf %88, %58 : vector<8x128xf32>
    %90 = arith.addf %86, %89 : vector<8x128xf32>
    %c19 = arith.constant 19 : index
    %91 = memref.load %arg2[%c19] : memref<48xf32, #tpu.memory_space<smem>>
    %92 = vector.broadcast %91 : f32 to vector<8x128xf32>
    %93 = arith.mulf %92, %59 : vector<8x128xf32>
    %94 = arith.addf %90, %93 : vector<8x128xf32>
    %c20 = arith.constant 20 : index
    %95 = memref.load %arg2[%c20] : memref<48xf32, #tpu.memory_space<smem>>
    %96 = vector.broadcast %95 : f32 to vector<8x128xf32>
    %97 = arith.mulf %96, %60 : vector<8x128xf32>
    %98 = arith.addf %94, %97 : vector<8x128xf32>
    %99 = arith.mulf %98, %98 : vector<8x128xf32>
    %100 = arith.addf %99, %53 : vector<8x128xf32>
    %c0_2 = arith.constant 0 : index
    %c0_3 = arith.constant 0 : index
    %c0_4 = arith.constant 0 : index
    %101 = vector.load %arg3[%c0_2, %c0_3, %c0_4] : memref<3x8x128xf32, #tpu.memory_space<vmem>>, vector<1x8x128xf32>
    %102 = vector.shape_cast %101 : vector<1x8x128xf32> to vector<8x128xf32>
    %103 = vector.shape_cast %100 : vector<8x128xf32> to vector<1x8x128xf32>
    tpu.vector_store %arg3[%c0_2, %c0_3, %c0_4], %103 {strides = array<i32>} : memref<3x8x128xf32, #tpu.memory_space<vmem>>, vector<1x8x128xf32>,
    %c40 = arith.constant 40 : index
    %104 = memref.load %arg2[%c40] : memref<48xf32, #tpu.memory_space<smem>>
    %c21 = arith.constant 21 : index
    %105 = memref.load %arg2[%c21] : memref<48xf32, #tpu.memory_space<smem>>
    %106 = vector.broadcast %105 : f32 to vector<8x128xf32>
    %107 = arith.mulf %106, %52 : vector<8x128xf32>
    %108 = vector.broadcast %104 : f32 to vector<8x128xf32>
    %109 = arith.addf %108, %107 : vector<8x128xf32>
    %c22 = arith.constant 22 : index
    %110 = memref.load %arg2[%c22] : memref<48xf32, #tpu.memory_space<smem>>
    %111 = vector.broadcast %110 : f32 to vector<8x128xf32>
    %112 = arith.mulf %111, %53 : vector<8x128xf32>
    %113 = arith.addf %109, %112 : vector<8x128xf32>
    %c23 = arith.constant 23 : index
    %114 = memref.load %arg2[%c23] : memref<48xf32, #tpu.memory_space<smem>>
    %115 = vector.broadcast %114 : f32 to vector<8x128xf32>
    %116 = arith.mulf %115, %54 : vector<8x128xf32>
    %117 = arith.addf %113, %116 : vector<8x128xf32>
    %c24 = arith.constant 24 : index
    %118 = memref.load %arg2[%c24] : memref<48xf32, #tpu.memory_space<smem>>
    %119 = vector.broadcast %118 : f32 to vector<8x128xf32>
    %120 = arith.mulf %119, %55 : vector<8x128xf32>
    %121 = arith.addf %117, %120 : vector<8x128xf32>
    %c25 = arith.constant 25 : index
    %122 = memref.load %arg2[%c25] : memref<48xf32, #tpu.memory_space<smem>>
    %123 = vector.broadcast %122 : f32 to vector<8x128xf32>
    %124 = arith.mulf %123, %56 : vector<8x128xf32>
    %125 = arith.addf %121, %124 : vector<8x128xf32>
    %c26 = arith.constant 26 : index
    %126 = memref.load %arg2[%c26] : memref<48xf32, #tpu.memory_space<smem>>
    %127 = vector.broadcast %126 : f32 to vector<8x128xf32>
    %128 = arith.mulf %127, %57 : vector<8x128xf32>
    %129 = arith.addf %125, %128 : vector<8x128xf32>
    %c27 = arith.constant 27 : index
    %130 = memref.load %arg2[%c27] : memref<48xf32, #tpu.memory_space<smem>>
    %131 = vector.broadcast %130 : f32 to vector<8x128xf32>
    %132 = arith.mulf %131, %58 : vector<8x128xf32>
    %133 = arith.addf %129, %132 : vector<8x128xf32>
    %c28 = arith.constant 28 : index
    %134 = memref.load %arg2[%c28] : memref<48xf32, #tpu.memory_space<smem>>
    %135 = vector.broadcast %134 : f32 to vector<8x128xf32>
    %136 = arith.mulf %135, %59 : vector<8x128xf32>
    %137 = arith.addf %133, %136 : vector<8x128xf32>
    %c29 = arith.constant 29 : index
    %138 = memref.load %arg2[%c29] : memref<48xf32, #tpu.memory_space<smem>>
    %139 = vector.broadcast %138 : f32 to vector<8x128xf32>
    %140 = arith.mulf %139, %60 : vector<8x128xf32>
    %141 = arith.addf %137, %140 : vector<8x128xf32>
    %142 = arith.mulf %141, %141 : vector<8x128xf32>
    %143 = arith.addf %142, %56 : vector<8x128xf32>
    %c1_5 = arith.constant 1 : index
    %c0_6 = arith.constant 0 : index
    %c0_7 = arith.constant 0 : index
    %144 = vector.load %arg3[%c1_5, %c0_6, %c0_7] : memref<3x8x128xf32, #tpu.memory_space<vmem>>, vector<1x8x128xf32>
    %145 = vector.shape_cast %144 : vector<1x8x128xf32> to vector<8x128xf32>
    %146 = vector.shape_cast %143 : vector<8x128xf32> to vector<1x8x128xf32>
    tpu.vector_store %arg3[%c1_5, %c0_6, %c0_7], %146 {strides = array<i32>} : memref<3x8x128xf32, #tpu.memory_space<vmem>>, vector<1x8x128xf32>,
    %c41 = arith.constant 41 : index
    %147 = memref.load %arg2[%c41] : memref<48xf32, #tpu.memory_space<smem>>
    %c30 = arith.constant 30 : index
    %148 = memref.load %arg2[%c30] : memref<48xf32, #tpu.memory_space<smem>>
    %149 = vector.broadcast %148 : f32 to vector<8x128xf32>
    %150 = arith.mulf %149, %52 : vector<8x128xf32>
    %151 = vector.broadcast %147 : f32 to vector<8x128xf32>
    %152 = arith.addf %151, %150 : vector<8x128xf32>
    %c31 = arith.constant 31 : index
    %153 = memref.load %arg2[%c31] : memref<48xf32, #tpu.memory_space<smem>>
    %154 = vector.broadcast %153 : f32 to vector<8x128xf32>
    %155 = arith.mulf %154, %53 : vector<8x128xf32>
    %156 = arith.addf %152, %155 : vector<8x128xf32>
    %c32 = arith.constant 32 : index
    %157 = memref.load %arg2[%c32] : memref<48xf32, #tpu.memory_space<smem>>
    %158 = vector.broadcast %157 : f32 to vector<8x128xf32>
    %159 = arith.mulf %158, %54 : vector<8x128xf32>
    %160 = arith.addf %156, %159 : vector<8x128xf32>
    %c33 = arith.constant 33 : index
    %161 = memref.load %arg2[%c33] : memref<48xf32, #tpu.memory_space<smem>>
    %162 = vector.broadcast %161 : f32 to vector<8x128xf32>
    %163 = arith.mulf %162, %55 : vector<8x128xf32>
    %164 = arith.addf %160, %163 : vector<8x128xf32>
    %c34 = arith.constant 34 : index
    %165 = memref.load %arg2[%c34] : memref<48xf32, #tpu.memory_space<smem>>
    %166 = vector.broadcast %165 : f32 to vector<8x128xf32>
    %167 = arith.mulf %166, %56 : vector<8x128xf32>
    %168 = arith.addf %164, %167 : vector<8x128xf32>
    %c35 = arith.constant 35 : index
    %169 = memref.load %arg2[%c35] : memref<48xf32, #tpu.memory_space<smem>>
    %170 = vector.broadcast %169 : f32 to vector<8x128xf32>
    %171 = arith.mulf %170, %57 : vector<8x128xf32>
    %172 = arith.addf %168, %171 : vector<8x128xf32>
    %c36 = arith.constant 36 : index
    %173 = memref.load %arg2[%c36] : memref<48xf32, #tpu.memory_space<smem>>
    %174 = vector.broadcast %173 : f32 to vector<8x128xf32>
    %175 = arith.mulf %174, %58 : vector<8x128xf32>
    %176 = arith.addf %172, %175 : vector<8x128xf32>
    %c37 = arith.constant 37 : index
    %177 = memref.load %arg2[%c37] : memref<48xf32, #tpu.memory_space<smem>>
    %178 = vector.broadcast %177 : f32 to vector<8x128xf32>
    %179 = arith.mulf %178, %59 : vector<8x128xf32>
    %180 = arith.addf %176, %179 : vector<8x128xf32>
    %c38 = arith.constant 38 : index
    %181 = memref.load %arg2[%c38] : memref<48xf32, #tpu.memory_space<smem>>
    %182 = vector.broadcast %181 : f32 to vector<8x128xf32>
    %183 = arith.mulf %182, %60 : vector<8x128xf32>
    %184 = arith.addf %180, %183 : vector<8x128xf32>
    %185 = arith.mulf %184, %184 : vector<8x128xf32>
    %186 = arith.addf %185, %59 : vector<8x128xf32>
    %c2_8 = arith.constant 2 : index
    %c0_9 = arith.constant 0 : index
    %c0_10 = arith.constant 0 : index
    %187 = vector.load %arg3[%c2_8, %c0_9, %c0_10] : memref<3x8x128xf32, #tpu.memory_space<vmem>>, vector<1x8x128xf32>
    %188 = vector.shape_cast %187 : vector<1x8x128xf32> to vector<8x128xf32>
    %189 = vector.shape_cast %186 : vector<8x128xf32> to vector<1x8x128xf32>
    tpu.vector_store %arg3[%c2_8, %c0_9, %c0_10], %189 {strides = array<i32>} : memref<3x8x128xf32, #tpu.memory_space<vmem>>, vector<1x8x128xf32>,
    return
  }
  func.func @transform_0(%arg0: i32) -> (i32, i32) {
    %c0_i32 = arith.constant 0 : i32
    %c0_i32_0 = arith.constant 0 : i32
    return %arg0, %c0_i32 : i32, i32
  }
  func.func @transform_1(%arg0: i32) -> i32 {
    %c0_i32 = arith.constant 0 : i32
    %c0_i32_0 = arith.constant 0 : i32
    return %c0_i32 : i32
  }
  func.func @transform_2(%arg0: i32) -> (i32, i32, i32) {
    %c0_i32 = arith.constant 0 : i32
    %c0_i32_0 = arith.constant 0 : i32
    %c0_i32_1 = arith.constant 0 : i32
    return %c0_i32, %arg0, %c0_i32_0 : i32, i32, i32
  }
}

</mosaic_0001>

<llo_original>
// kernel: conv_chain.1
$region0: #{conv_chain.1}
  #allocation0 [shape = 'u32[]', space=smem, size = 0x4, offset = 0x4, fixed_abs, tag = 'smem constant byte address 0x4 - core index']
  #allocation1 [shape = 'u32[144,128]{1,0:T(1,128)}', space=vmem, size = 0x12000, scoped, tag = 'internal scratch']
  %s0 = inlined_call_operand.vmem [shape: f32[16,132], index: 0, kind: input, shape index: {}]
  %s1 = inlined_call_operand.vmem [shape: f32[48], index: 1, kind: input, shape index: {}]
  %s2 = inlined_call_operand.hbm [shape: f32[3,16,128], index: 2, kind: output, shape index: {}]
  %s3 = sld [smem:[#allocation0]]
  $region45: #{conv_chain.1} parent=0
    _
  %s5 = ssub.s32 1, %s3
  %s6 = scalar_select 0, %s5, %s3
  $region1: #{conv_chain.1} parent=0
    #allocation2 [shape = 'u8[512]{0}', space=smem, size = 0x200, scoped, tag = 'input window, operand 1, single buffered']
    #allocation3 [shape = 's32[2]{0}', space=sflag, size = 0x8, scoped, tag = 'scoped memory for conv_chain.1']
    #allocation4 [shape = 's32[2]{0}', space=sflag, size = 0x8, scoped, tag = 'scoped memory for conv_chain.1']
    #allocation5 [shape = 'u8[24576]{0}', space=vmem, size = 0x6000, scoped, tag = 'output window, operand 0']
    %7 = vsyncpa [#allocation4], 0
    %8 = vsyncpa [#allocation3], 0
    %s9 = scalar_lea.sflag [#allocation3], 1
    %10 = vsyncpa %s9, 0
    loop: start=0, step=1, limit=4
    $region2: #{conv_chain.1} parent=1 // loop_pre_header
      _
    $region3: #{conv_chain.1} parent=1 // loop_header
      %s12 = sphi 0, %s16
      %p13 = scmp.ge.s32.totalorder %s12, 4
      %s22 = sphi 0, %s24
      %s25 = sphi 0, %s22
      %s26 = sphi 0, %s25
      %s42 = sphi 0, %s26
      %s46 = sphi 0, %s46
      %s48 = sphi 0, %s46
      %s49 = sphi 0, %s48
      %s63 = sphi 0, %s49
      %s69 = sphi 0, %s71
      %s72 = sphi 0, %s69
      %s73 = sphi 0, %s72
      %s89 = sphi 0, %s73
    $region4: #{conv_chain.1} parent=1 // loop_header_branch
      %15 = sbr.rel (%p13) target = $region8
    $region5: #{conv_chain.1} parent=1 // loop_body
      %s17 = ssub.s32 %s12, 1
      %s18 = ssub.s32 %s12, 2
      %s19 = sadd.s32 %s12, 1
      %s20 = ssub.s32 %s12, %s19
      %p21 = scmp.eq.s32.totalorder %s20, 0
      %s23 = sadd.s32 %s22, 1
      %s24 = scalar_select %p21, %s22, %s23
      %p27 = pneg %p21
      %p28 = scmp.eq.s32.totalorder %s12, 1
      %p29 = por %p27, %p28
      %p30 = scmp.ne.s32.totalorder %s22, %s25
      %p31 = scmp.eq.s32.totalorder %s12, 0
      %p32 = por %p30, %p31
      %p33 = scmp.ne.s32.totalorder %s22, %s25
      %p34 = scmp.eq.s32.totalorder %s17, 1
      %p35 = por %p33, %p34
      %p36 = scmp.ne.s32.totalorder %s25, %s26
      %p37 = scmp.eq.s32.totalorder %s17, 0
      %p38 = por %p36, %p37
      %p39 = scmp.ne.s32.totalorder %s25, %s26
      %p40 = scmp.eq.s32.totalorder %s18, 1
      %p41 = por %p39, %p40
      %p43 = scmp.ne.s32.totalorder %s26, %s42
      %p44 = scmp.eq.s32.totalorder %s18, 0
      %p45 = por %p43, %p44
      %s47 = sadd.s32 %s46, 1
      %p50 = scmp.eq.s32.totalorder %s12, 1
      %p51 = scmp.ne.s32.totalorder %s46, %s48
      %p52 = scmp.eq.s32.totalorder %s12, 0
      %p53 = por %p51, %p52
      %p54 = scmp.ne.s32.totalorder %s46, %s48
      %p55 = scmp.eq.s32.totalorder %s17, 1
      %p56 = por %p54, %p55
      %p57 = scmp.ne.s32.totalorder %s48, %s49
      %p58 = scmp.eq.s32.totalorder %s17, 0
      %p59 = por %p57, %p58
      %p60 = scmp.ne.s32.totalorder %s48, %s49
      %p61 = scmp.eq.s32.totalorder %s18, 1
      %p62 = por %p60, %p61
      %p64 = scmp.ne.s32.totalorder %s49, %s63
      %p65 = scmp.eq.s32.totalorder %s18, 0
      %p66 = por %p64, %p65
      %s67 = ssub.s32 %s12, %s19
      %p68 = scmp.eq.s32.totalorder %s67, 0
      %s70 = sadd.s32 %s69, 1
      %s71 = scalar_select %p68, %s69, %s70
      %p74 = pneg %p68
      %p75 = scmp.eq.s32.totalorder %s12, 1
      %p76 = por %p74, %p75
      %p77 = scmp.ne.s32.totalorder %s69, %s72
      %p78 = scmp.eq.s32.totalorder %s12, 0
      %p79 = por %p77, %p78
      %p80 = scmp.ne.s32.totalorder %s69, %s72
      %p81 = scmp.eq.s32.totalorder %s17, 1
      %p82 = por %p80, %p81
      %p83 = scmp.ne.s32.totalorder %s72, %s73
      %p84 = scmp.eq.s32.totalorder %s17, 0
      %p85 = por %p83, %p84
      %p86 = scmp.ne.s32.totalorder %s72, %s73
      %p87 = scmp.eq.s32.totalorder %s18, 1
      %p88 = por %p86, %p87
      %p90 = scmp.ne.s32.totalorder %s73, %s89
      %p91 = scmp.eq.s32.totalorder %s18, 0
      %p92 = por %p90, %p91
      %p93 = scmp.le.s32.totalorder 1, %s12
      %p94 = scmp.lt.s32.totalorder %s12, 3
      %p95 = pnand %p93, %p94
      %p96 = pneg %p95
      // Predicated region
      $region9: #{conv_chain.1} parent=5 // pred_check
        _
      $region10: #{conv_chain.1} parent=5 // pred_check_branch
        %98 = sbr.rel (%p95) target = $region12
      $region11: #{conv_chain.1} parent=5 // pred_region
        %s99 = ssub.s32 %s12, 1
        // Predicated region
        $region13: #{conv_chain.1} parent=11 // pred_check
          %p100 = pneg %p59
        $region14: #{conv_chain.1} parent=11 // pred_check_branch
          %102 = sbr.rel (%p100) target = $region16
        $region15: #{conv_chain.1} parent=11 // pred_region
          %s104 = ssub.s32 16, 16
          %105 = vsyncadd [#allocation4], %s104
          %s107 = sshll.u32 %s1, 4
          %s108 = int_to_ptr.vmem [resolvable:$true] %s107
          %110 = dma.vmem_to_smem %s108, 16, [#allocation2], [#allocation4]
        $region16: #{conv_chain.1} parent=11 // pred_fallthru
          _
      $region12: #{conv_chain.1} parent=5 // pred_fallthru
        _
      %p111 = scmp.lt.s32.totalorder %s12, 2
      // Predicated region
      $region17: #{conv_chain.1} parent=5 // pred_check
        %p112 = pneg %p111
      $region18: #{conv_chain.1} parent=5 // pred_check_branch
        %114 = sbr.rel (%p112) target = $region20
      $region19: #{conv_chain.1} parent=5 // pred_region
        // Predicated region
        $region21: #{conv_chain.1} parent=19 // pred_check
          %p115 = pneg %p32
        $region22: #{conv_chain.1} parent=19 // pred_check_branch
          %117 = sbr.rel (%p115) target = $region24
        $region23: #{conv_chain.1} parent=19 // pred_region
          %p118 = scmp.lt.s32.totalorder %s12, 1
          %s119 = scalar_select %p118, %s12, 1
          %s120 = smul.addr %s119, 2
          %s121 = smul.addr %s120, 8
          %s122 = scalar_lea.vmem %s0, %s121
        $region24: #{conv_chain.1} parent=19 // pred_fallthru
          _
      $region20: #{conv_chain.1} parent=5 // pred_fallthru
        _
      %p123 = scmp.le.s32.totalorder 1, %s12
      %p124 = scmp.lt.s32.totalorder %s12, 3
      %p125 = pnand %p123, %p124
      %p126 = pneg %p125
      // Predicated region
      $region25: #{conv_chain.1} parent=5 // pred_check
        _
      $region26: #{conv_chain.1} parent=5 // pred_check_branch
        %128 = sbr.rel (%p125) target = $region28
      $region27: #{conv_chain.1} parent=5 // pred_region
        %s129 = ssub.s32 %s12, 1
        // Predicated region
        $region29: #{conv_chain.1} parent=27 // pred_check
          %p130 = pneg %p59
        $region30: #{conv_chain.1} parent=27 // pred_check_branch
          %132 = sbr.rel (%p130) target = $region32
        $region31: #{conv_chain.1} parent=27 // pred_region
          %133 = dma.done [#allocation4], 16
        $region32: #{conv_chain.1} parent=27 // pred_fallthru
          _
        %134 = sfence
        %p135 = scmp.lt.s32.totalorder %s17, 1
        %s136 = scalar_select %p135, %s17, 1
        %s137 = smul.addr %s136, 2
        %s138 = smul.addr %s137, 8
        %s139 = scalar_lea.vmem %s0, %s138
        %p140 = pneg %p38
        %p141 = pneg %p35
        %p142 = pneg %p59
        %p143 = pneg %p56
        %p144 = pneg %p85
        %p145 = pneg %p82
        %s146 = sand.u32 %s72, 1
        %s147 = scalar_lea.sflag [#allocation3], %s146
        %s148 = sand.u32 %s72, 1
        %s149 = smul.addr %s148, 24
        %s150 = scalar_lea.vmem [#allocation5], %s149
        %p151 = scmp.lt.s32.totalorder %s17, 1
        %s152 = scalar_select %p151, %s17, 1
        %s153 = smul.addr %s152, 2
        %s154 = smul.addr %s153, 8
        %s155 = scalar_lea.vmem %s0, %s154
        %v156 = vld [vmem:[%s155] sm:$0xff]
        %v157 = vld [vmem:[%s155 + $0x8] sm:$0xff]
        %s158 = sld [smem:[#allocation2 + $0x9]]
        %s159 = sld [smem:[#allocation2]]
        %v160 = vstv %s159
        %v161 = vmul.f32 %v160, %v156
        %v162 = vmul.f32 %v160, %v157
        %v163 = vstv %s158
        %v164 = vadd.f32 %v163, %v161
        %v165 = vadd.f32 %v163, %v162
        %s166 = sld [smem:[#allocation2 + $0x1]]
        %v167 = vstv %s166
        %v168 = vmul.f32 %v167, %v156
        %v169 = vmul.f32 %v167, %v157
        %172 = vrot.lane.b32.xlu0 %v168, 127
        %v173 = vpop.permute.xlu0 %172
        %174 = vrot.lane.b32.xlu0 %v169, 127
        %v175 = vpop.permute.xlu0 %174
        %vm176 = vcmask 1039360
        %v177 = vsel %vm176, %v173, %v175
        %v180 = vadd.f32 %v164, %v177
        %v181 = vadd.f32 %v165, %v175
        %s182 = sld [smem:[#allocation2 + $0x2]]
        %v183 = vstv %s182
        %v184 = vmul.f32 %v183, %v156
        %v185 = vmul.f32 %v183, %v157
        %188 = vrot.lane.b32.xlu0 %v184, 126
        %v189 = vpop.permute.xlu0 %188
        %190 = vrot.lane.b32.xlu0 %v185, 126
        %v191 = vpop.permute.xlu0 %190
        %vm192 = vcmask 1031168
        %v193 = vsel %vm192, %v189, %v191
        %v196 = vadd.f32 %v180, %v193
        %v197 = vadd.f32 %v181, %v191
        %s198 = sld [smem:[#allocation2 + $0xa]]
        %s199 = sld [smem:[#allocation2 + $0x3]]
        %v200 = vstv %s199
        %v201 = vmul.f32 %v200, %v156
        %v202 = vmul.f32 %v200, %v157
        %v203 = vstv %s198
        %v204 = vadd.f32 %v203, %v201
        %v205 = vadd.f32 %v203, %v202
        %s206 = sld [smem:[#allocation2 + $0x4]]
        %v207 = vstv %s206
        %v208 = vmul.f32 %v207, %v156
        %v209 = vmul.f32 %v207, %v157
        %212 = vrot.lane.b32.xlu0 %v208, 127
        %v213 = vpop.permute.xlu0 %212
        %214 = vrot.lane.b32.xlu0 %v209, 127
        %v215 = vpop.permute.xlu0 %214
        %v216 = vsel %vm176, %v213, %v215
        %v219 = vadd.f32 %v204, %v216
        %v220 = vadd.f32 %v205, %v215
        %s221 = sld [smem:[#allocation2 + $0x5]]
        %v222 = vstv %s221
        %v223 = vmul.f32 %v222, %v156
        %v224 = vmul.f32 %v222, %v157
        %227 = vrot.lane.b32.xlu0 %v223, 126
        %v228 = vpop.permute.xlu0 %227
        %229 = vrot.lane.b32.xlu0 %v224, 126
        %v230 = vpop.permute.xlu0 %229
        %v231 = vsel %vm192, %v228, %v230
        %v234 = vadd.f32 %v219, %v231
        %v235 = vadd.f32 %v220, %v230
        %s236 = sld [smem:[#allocation2 + $0xb]]
        %s237 = sld [smem:[#allocation2 + $0x6]]
        %v238 = vstv %s237
        %v239 = vmul.f32 %v238, %v156
        %v240 = vmul.f32 %v238, %v157
        %v241 = vstv %s236
        %v242 = vadd.f32 %v241, %v239
        %v243 = vadd.f32 %v241, %v240
        %s244 = sld [smem:[#allocation2 + $0x7]]
        %v245 = vstv %s244
        %v246 = vmul.f32 %v245, %v156
        %v247 = vmul.f32 %v245, %v157
        %250 = vrot.lane.b32.xlu0 %v246, 127
        %v251 = vpop.permute.xlu0 %250
        %252 = vrot.lane.b32.xlu0 %v247, 127
        %v253 = vpop.permute.xlu0 %252
        %v254 = vsel %vm176, %v251, %v253
        %v257 = vadd.f32 %v242, %v254
        %v258 = vadd.f32 %v243, %v253
        %s259 = sld [smem:[#allocation2 + $0x8]]
        %v260 = vstv %s259
        %v261 = vmul.f32 %v260, %v156
        %v262 = vmul.f32 %v260, %v157
        %265 = vrot.lane.b32.xlu0 %v261, 126
        %v266 = vpop.permute.xlu0 %265
        %267 = vrot.lane.b32.xlu0 %v262, 126
        %v268 = vpop.permute.xlu0 %267
        %v269 = vsel %vm192, %v266, %v268
        %v272 = vadd.f32 %v257, %v269
        %v273 = vadd.f32 %v258, %v268
        %s274 = sld [smem:[#allocation2 + $0x27]]
        %s275 = sld [smem:[#allocation2 + $0xc]]
        %v276 = vstv %s275
        %v277 = vmul.f32 %v276, %v196
        %v278 = vstv %s274
        %v279 = vadd.f32 %v278, %v277
        %s280 = sld [smem:[#allocation2 + $0xd]]
        %v281 = vstv %s280
        %v282 = vmul.f32 %v281, %v196
        %v283 = vmul.f32 %v281, %v197
        %286 = vrot.lane.b32.xlu0 %v282, 127
        %v287 = vpop.permute.xlu0 %286
        %288 = vrot.lane.b32.xlu0 %v283, 127
        %v289 = vpop.permute.xlu0 %288
        %v290 = vsel %vm176, %v287, %v289
        %v292 = vadd.f32 %v279, %v290
        %s293 = sld [smem:[#allocation2 + $0xe]]
        %v294 = vstv %s293
        %v295 = vmul.f32 %v294, %v196
        %v296 = vmul.f32 %v294, %v197
        %299 = vrot.lane.b32.xlu0 %v295, 126
        %v300 = vpop.permute.xlu0 %299
        %301 = vrot.lane.b32.xlu0 %v296, 126
        %v302 = vpop.permute.xlu0 %301
        %v303 = vsel %vm192, %v300, %v302
        %v305 = vadd.f32 %v292, %v303
        %s306 = sld [smem:[#allocation2 + $0xf]]
        %v307 = vstv %s306
        %v308 = vmul.f32 %v307, %v234
        %v309 = vadd.f32 %v305, %v308
        %s310 = sld [smem:[#allocation2 + $0x10]]
        %v311 = vstv %s310
        %v312 = vmul.f32 %v311, %v234
        %v313 = vmul.f32 %v311, %v235
        %316 = vrot.lane.b32.xlu0 %v312, 127
        %v317 = vpop.permute.xlu0 %316
        %318 = vrot.lane.b32.xlu0 %v313, 127
        %v319 = vpop.permute.xlu0 %318
        %v320 = vsel %vm176, %v317, %v319
        %v322 = vadd.f32 %v309, %v320
        %s323 = sld [smem:[#allocation2 + $0x11]]
        %v324 = vstv %s323
        %v325 = vmul.f32 %v324, %v234
        %v326 = vmul.f32 %v324, %v235
        %329 = vrot.lane.b32.xlu0 %v325, 126
        %v330 = vpop.permute.xlu0 %329
        %331 = vrot.lane.b32.xlu0 %v326, 126
        %v332 = vpop.permute.xlu0 %331
        %v333 = vsel %vm192, %v330, %v332
        %v335 = vadd.f32 %v322, %v333
        %s336 = sld [smem:[#allocation2 + $0x12]]
        %v337 = vstv %s336
        %v338 = vmul.f32 %v337, %v272
        %v339 = vadd.f32 %v335, %v338
        %s340 = sld [smem:[#allocation2 + $0x13]]
        %v341 = vstv %s340
        %v342 = vmul.f32 %v341, %v272
        %v343 = vmul.f32 %v341, %v273
        %346 = vrot.lane.b32.xlu0 %v342, 127
        %v347 = vpop.permute.xlu0 %346
        %348 = vrot.lane.b32.xlu0 %v343, 127
        %v349 = vpop.permute.xlu0 %348
        %v350 = vsel %vm176, %v347, %v349
        %v352 = vadd.f32 %v339, %v350
        %s353 = sld [smem:[#allocation2 + $0x14]]
        %v354 = vstv %s353
        %v355 = vmul.f32 %v354, %v272
        %v356 = vmul.f32 %v354, %v273
        %359 = vrot.lane.b32.xlu0 %v355, 126
        %v360 = vpop.permute.xlu0 %359
        %361 = vrot.lane.b32.xlu0 %v356, 126
        %v362 = vpop.permute.xlu0 %361
        %v363 = vsel %vm192, %v360, %v362
        %v365 = vadd.f32 %v352, %v363
        %v366 = vmul.f32 %v365, %v365
        %369 = vrot.lane.b32.xlu0 %v196, 127
        %v370 = vpop.permute.xlu0 %369
        %371 = vrot.lane.b32.xlu0 %v197, 127
        %v372 = vpop.permute.xlu0 %371
        %v373 = vsel %vm176, %v370, %v372
        %v375 = vadd.f32 %v366, %v373
        %376 = vst [vmem:[%s150] sm:$0xff] %v375
        %s377 = sld [smem:[#allocation2 + $0x28]]
        %s378 = sld [smem:[#allocation2 + $0x15]]
        %v379 = vstv %s378
        %v380 = vmul.f32 %v379, %v196
        %v381 = vstv %s377
        %v382 = vadd.f32 %v381, %v380
        %s383 = sld [smem:[#allocation2 + $0x16]]
        %v384 = vstv %s383
        %v385 = vmul.f32 %v384, %v196
        %v386 = vmul.f32 %v384, %v197
        %389 = vrot.lane.b32.xlu0 %v385, 127
        %v390 = vpop.permute.xlu0 %389
        %391 = vrot.lane.b32.xlu0 %v386, 127
        %v392 = vpop.permute.xlu0 %391
        %v393 = vsel %vm176, %v390, %v392
        %v395 = vadd.f32 %v382, %v393
        %s396 = sld [smem:[#allocation2 + $0x17]]
        %v397 = vstv %s396
        %v398 = vmul.f32 %v397, %v196
        %v399 = vmul.f32 %v397, %v197
        %402 = vrot.lane.b32.xlu0 %v398, 126
        %v403 = vpop.permute.xlu0 %402
        %404 = vrot.lane.b32.xlu0 %v399, 126
        %v405 = vpop.permute.xlu0 %404
        %v406 = vsel %vm192, %v403, %v405
        %v408 = vadd.f32 %v395, %v406
        %s409 = sld [smem:[#allocation2 + $0x18]]
        %v410 = vstv %s409
        %v411 = vmul.f32 %v410, %v234
        %v412 = vadd.f32 %v408, %v411
        %s413 = sld [smem:[#allocation2 + $0x19]]
        %v414 = vstv %s413
        %v415 = vmul.f32 %v414, %v234
        %v416 = vmul.f32 %v414, %v235
        %419 = vrot.lane.b32.xlu0 %v415, 127
        %v420 = vpop.permute.xlu0 %419
        %421 = vrot.lane.b32.xlu0 %v416, 127
        %v422 = vpop.permute.xlu0 %421
        %v423 = vsel %vm176, %v420, %v422
        %v425 = vadd.f32 %v412, %v423
        %s426 = sld [smem:[#allocation2 + $0x1a]]
        %v427 = vstv %s426
        %v428 = vmul.f32 %v427, %v234
        %v429 = vmul.f32 %v427, %v235
        %432 = vrot.lane.b32.xlu0 %v428, 126
        %v433 = vpop.permute.xlu0 %432
        %434 = vrot.lane.b32.xlu0 %v429, 126
        %v435 = vpop.permute.xlu0 %434
        %v436 = vsel %vm192, %v433, %v435
        %v438 = vadd.f32 %v425, %v436
        %s439 = sld [smem:[#allocation2 + $0x1b]]
        %v440 = vstv %s439
        %v441 = vmul.f32 %v440, %v272
        %v442 = vadd.f32 %v438, %v441
        %s443 = sld [smem:[#allocation2 + $0x1c]]
        %v444 = vstv %s443
        %v445 = vmul.f32 %v444, %v272
        %v446 = vmul.f32 %v444, %v273
        %449 = vrot.lane.b32.xlu0 %v445, 127
        %v450 = vpop.permute.xlu0 %449
        %451 = vrot.lane.b32.xlu0 %v446, 127
        %v452 = vpop.permute.xlu0 %451
        %v453 = vsel %vm176, %v450, %v452
        %v455 = vadd.f32 %v442, %v453
        %s456 = sld [smem:[#allocation2 + $0x1d]]
        %v457 = vstv %s456
        %v458 = vmul.f32 %v457, %v272
        %v459 = vmul.f32 %v457, %v273
        %462 = vrot.lane.b32.xlu0 %v458, 126
        %v463 = vpop.permute.xlu0 %462
        %464 = vrot.lane.b32.xlu0 %v459, 126
        %v465 = vpop.permute.xlu0 %464
        %v466 = vsel %vm192, %v463, %v465
        %v468 = vadd.f32 %v455, %v466
        %v469 = vmul.f32 %v468, %v468
        %472 = vrot.lane.b32.xlu0 %v234, 127
        %v473 = vpop.permute.xlu0 %472
        %474 = vrot.lane.b32.xlu0 %v235, 127
        %v475 = vpop.permute.xlu0 %474
        %v476 = vsel %vm176, %v473, %v475
        %v478 = vadd.f32 %v469, %v476
        %s479 = scalar_lea.vmem %s150, 8 [#allocation5]
        %480 = vst [vmem:[%s479] sm:$0xff] %v478
        %s481 = sld [smem:[#allocation2 + $0x29]]
        %s482 = sld [smem:[#allocation2 + $0x1e]]
        %v483 = vstv %s482
        %v484 = vmul.f32 %v483, %v196
        %v485 = vstv %s481
        %v486 = vadd.f32 %v485, %v484
        %s487 = sld [smem:[#allocation2 + $0x1f]]
        %v488 = vstv %s487
        %v489 = vmul.f32 %v488, %v196
        %v490 = vmul.f32 %v488, %v197
        %493 = vrot.lane.b32.xlu0 %v489, 127
        %v494 = vpop.permute.xlu0 %493
        %495 = vrot.lane.b32.xlu0 %v490, 127
        %v496 = vpop.permute.xlu0 %495
        %v497 = vsel %vm176, %v494, %v496
        %v499 = vadd.f32 %v486, %v497
        %s500 = sld [smem:[#allocation2 + $0x20]]
        %v501 = vstv %s500
        %v502 = vmul.f32 %v501, %v196
        %v503 = vmul.f32 %v501, %v197
        %506 = vrot.lane.b32.xlu0 %v502, 126
        %v507 = vpop.permute.xlu0 %506
        %508 = vrot.lane.b32.xlu0 %v503, 126
        %v509 = vpop.permute.xlu0 %508
        %v510 = vsel %vm192, %v507, %v509
        %v512 = vadd.f32 %v499, %v510
        %s513 = sld [smem:[#allocation2 + $0x21]]
        %v514 = vstv %s513
        %v515 = vmul.f32 %v514, %v234
        %v516 = vadd.f32 %v512, %v515
        %s517 = sld [smem:[#allocation2 + $0x22]]
        %v518 = vstv %s517
        %v519 = vmul.f32 %v518, %v234
        %v520 = vmul.f32 %v518, %v235
        %523 = vrot.lane.b32.xlu0 %v519, 127
        %v524 = vpop.permute.xlu0 %523
        %525 = vrot.lane.b32.xlu0 %v520, 127
        %v526 = vpop.permute.xlu0 %525
        %v527 = vsel %vm176, %v524, %v526
        %v529 = vadd.f32 %v516, %v527
        %s530 = sld [smem:[#allocation2 + $0x23]]
        %v531 = vstv %s530
        %v532 = vmul.f32 %v531, %v234
        %v533 = vmul.f32 %v531, %v235
        %536 = vrot.lane.b32.xlu0 %v532, 126
        %v537 = vpop.permute.xlu0 %536
        %538 = vrot.lane.b32.xlu0 %v533, 126
        %v539 = vpop.permute.xlu0 %538
        %v540 = vsel %vm192, %v537, %v539
        %v542 = vadd.f32 %v529, %v540
        %s543 = sld [smem:[#allocation2 + $0x24]]
        %v544 = vstv %s543
        %v545 = vmul.f32 %v544, %v272
        %v546 = vadd.f32 %v542, %v545
        %s547 = sld [smem:[#allocation2 + $0x25]]
        %v548 = vstv %s547
        %v549 = vmul.f32 %v548, %v272
        %v550 = vmul.f32 %v548, %v273
        %553 = vrot.lane.b32.xlu0 %v549, 127
        %v554 = vpop.permute.xlu0 %553
        %555 = vrot.lane.b32.xlu0 %v550, 127
        %v556 = vpop.permute.xlu0 %555
        %v557 = vsel %vm176, %v554, %v556
        %v559 = vadd.f32 %v546, %v557
        %s560 = sld [smem:[#allocation2 + $0x26]]
        %v561 = vstv %s560
        %v562 = vmul.f32 %v561, %v272
        %v563 = vmul.f32 %v561, %v273
        %566 = vrot.lane.b32.xlu0 %v562, 126
        %v567 = vpop.permute.xlu0 %566
        %568 = vrot.lane.b32.xlu0 %v563, 126
        %v569 = vpop.permute.xlu0 %568
        %v570 = vsel %vm192, %v567, %v569
        %v572 = vadd.f32 %v559, %v570
        %v573 = vmul.f32 %v572, %v572
        %576 = vrot.lane.b32.xlu0 %v272, 127
        %v577 = vpop.permute.xlu0 %576
        %578 = vrot.lane.b32.xlu0 %v273, 127
        %v579 = vpop.permute.xlu0 %578
        %v580 = vsel %vm176, %v577, %v579
        %v582 = vadd.f32 %v573, %v580
        %s583 = scalar_lea.vmem %s150, 16 [#allocation5]
        %584 = vst [vmem:[%s583] sm:$0xff] %v582
        %s585 = sand.u32 %s72, 1
        %s586 = scalar_lea.sflag [#allocation3], %s585
        %s587 = sand.u32 %s72, 1
        %s588 = smul.addr %s587, 24
        %s589 = scalar_lea.vmem [#allocation5], %s588
        // Predicated region
        $region33: #{conv_chain.1} parent=27 // pred_check
          %p590 = pneg %p82
        $region34: #{conv_chain.1} parent=27 // pred_check_branch
          %592 = sbr.rel (%p590) target = $region36
        $region35: #{conv_chain.1} parent=27 // pred_region
          %s594 = ssub.s32 384, 384
          %595 = vsyncadd %s586, %s594
          %s596 = smul.addr %s17, 128
          %s597 = scalar_lea.hbm %s2, %s596
          %s598 = sshll.u32 %s589, 4
          %s599 = int_to_ptr.vmem [resolvable:$true] %s598
          %604 = dma.vmem_to_hbm [thread:$0]  %s599, 384, %s597, %s586, 128, 256, 8
        $region36: #{conv_chain.1} parent=27 // pred_fallthru
          _
      $region28: #{conv_chain.1} parent=5 // pred_fallthru
        _
      %p605 = scmp.le.s32.totalorder 2, %s12
      // Predicated region
      $region37: #{conv_chain.1} parent=5 // pred_check
        %p606 = pneg %p605
      $region38: #{conv_chain.1} parent=5 // pred_check_branch
        %608 = sbr.rel (%p606) target = $region40
      $region39: #{conv_chain.1} parent=5 // pred_region
        %s609 = ssub.s32 %s12, 2
        // Predicated region
        $region41: #{conv_chain.1} parent=39 // pred_check
          %p610 = pneg %p88
        $region42: #{conv_chain.1} parent=39 // pred_check_branch
          %612 = sbr.rel (%p610) target = $region44
        $region43: #{conv_chain.1} parent=39 // pred_region
          %s613 = sand.u32 %s73, 1
          %s614 = scalar_lea.sflag [#allocation3], %s613
          %s615 = sand.u32 %s73, 1
          %s616 = smul.addr %s615, 24
          %s617 = scalar_lea.vmem [#allocation5], %s616
          %618 = dma.done %s614, 384
        $region44: #{conv_chain.1} parent=39 // pred_fallthru
          _
      $region40: #{conv_chain.1} parent=5 // pred_fallthru
        _
    $region6: #{conv_chain.1} parent=1 // loop_footer
      %s16 = sadd.s32 1, %s12
    $region7: #{conv_chain.1} parent=1 // loop_footer_branch
      %11 = sbr.rel target = $region3
    $region8: #{conv_chain.1} parent=1 // loop_exit
      _
    %619 = vsyncpa [#allocation3], 1
    %s620 = scalar_lea.sflag [#allocation3], 1
    %621 = vsyncpa %s620, 1
    %622 = vsyncpa [#allocation4], 1
    %s623 = scalar_lea.sflag [#allocation4], 1
    %624 = vsyncpa %s623, 1

</llo_original>
